<compile_context>
chip_gen: v7x
topology: tpu7x:2x2x1
jax: 0.10.0
libtpu: 0.0.40
codegen_flags: <defaults>
</compile_context>

<pallas_src>
import functools

import jax
import jax.numpy as jnp
import numpy as np
from jax.experimental import pallas as pl
from jax.experimental.pallas import tpu as pltpu

LANE = 128
BF16_SUBLANE = 16


def _ceil_to(n, m):
    return (n + m - 1) // m * m


def _pad2d(a, rows, cols, fill=0.0):
    return jnp.pad(a, ((0, rows - a.shape[0]), (0, cols - a.shape[1])),
                   constant_values=fill)


def moe_net_kernel(x_ref, w1_ref, b1_ref, wcomb_ref, bcomb_ref, w2_ref, b2_ref,
                   out_ref, *, num_experts, hidden_pad, gate_pad):
    # fc1 + relu.  x arrives f32 and is cast to bf16 in-kernel (VPU work hidden
    # under the MXU; avoids a separate HBM pass for the cast in the wrapper).
    x_bf = x_ref[...].astype(jnp.bfloat16)
    h = jnp.dot(x_bf, w1_ref[...],
                preferred_element_type=jnp.float32) + b1_ref[...]       # [BT, HP]
    h = jnp.maximum(h, 0.0)
    h_bf = h.astype(jnp.bfloat16)

    # Gate + ALL experts in one wide matmul: [BT, HP] @ [HP, GP + E*HP].
    # At H=128 the RHS is 512 wide -> exactly two native 256-wide MXU passes on
    # v6e/v7x (four 128-wide on v5e), with a single weight-load/drain sequence.
    comb = jnp.dot(h_bf, wcomb_ref[...],
                   preferred_element_type=jnp.float32) + bcomb_ref[...]

    # Softmax over the first GP columns.  Padded gate columns carry bias -1e30
    # so their exp is exactly 0 and only the real E experts participate.
    gates = comb[:, :gate_pad]                                          # [BT, GP]
    m = jnp.max(gates, axis=-1, keepdims=True)
    eg = jnp.exp(gates - m)                                             # [BT, GP]
    denom = jnp.sum(eg, axis=-1, keepdims=True)                         # [BT, 1]
    inv = pl.reciprocal(denom, approx=True)                             # EUP slot

    # Weighted sum over experts with the softmax normalization folded into the
    # [BT,1] gate scalars (no [BT,HP] divide in the epilogue).
    eo_all = comb[:, gate_pad:]                                         # [BT, E*HP]
    gate_cols = [eg[:, e:e + 1] * inv for e in range(num_experts)]      # hoisted
    moe = gate_cols[0] * eo_all[:, 0:hidden_pad]
    for e in range(1, num_experts):                                     # E small
        moe = moe + gate_cols[e] * eo_all[:, e * hidden_pad:(e + 1) * hidden_pad]

    # relu + fc2 (lane-dense padded output; real columns sliced off by caller).
    moe_bf = jnp.maximum(moe, 0.0).astype(jnp.bfloat16)
    out = jnp.dot(moe_bf, w2_ref[...],
                  preferred_element_type=jnp.float32) + b2_ref[...]     # [BT, OP]
    out_ref[...] = out.astype(out_ref.dtype)


def pack_params(params):
    """Pad / fuse / transpose / bf16-cast weights ONCE (at init / param-load
    time), keeping this work out of the per-forward hot path."""
    w1, b1, we, be, wg, bg, w2, b2 = params
    IN = w1.shape[0]
    E, H, _ = we.shape
    O = w2.shape[1]

    HP = _ceil_to(H, LANE)   # lane-aligned hidden / per-expert chunk width
    GP = _ceil_to(E, LANE)   # lane-dense gate width
    OP = _ceil_to(O, LANE)   # lane-dense output width

    bf = jnp.bfloat16
    # fc1 (bf16 weights, f32 bias).
    w1p = _pad2d(w1, IN, HP).astype(bf)
    b1p = _pad2d(b1, 1, HP)
    # Gate fused with all experts into a single wide RHS [HP, GP + E*HP].
    wgp = _pad2d(wg, HP, GP)                                    # zero-padded cols
    wep = jnp.pad(we, ((0, 0), (0, HP - H), (0, HP - H)))
    wallp = jnp.transpose(wep, (1, 0, 2)).reshape(HP, E * HP)
    wcombp = jnp.concatenate([wgp, wallp], axis=1).astype(bf)
    # Combined bias: padded gate logits get -1e30 -> softmax weight exactly 0;
    # padded expert-output columns are zero.
    bgp = _pad2d(bg, 1, GP, fill=-1e30)
    ballp = jnp.pad(be, ((0, 0), (0, HP - H))).reshape(1, E * HP)
    bcombp = jnp.concatenate([bgp, ballp], axis=1)
    # fc2.
    w2p = _pad2d(w2, HP, OP).astype(bf)
    b2p = _pad2d(b2, 1, OP)

    dims = dict(num_experts=E, in_features=IN, hidden=H, out_features=O,
                hidden_pad=HP, gate_pad=GP, out_pad=OP)
    return (w1p, b1p, wcombp, bcombp, w2p, b2p), dims


def simple_moe_net(x, packed, dims, *, batch_tile=None):
    w1p, b1p, wcombp, bcombp, w2p, b2p = packed
    B, IN = x.shape
    E = dims["num_experts"]
    HP = dims["hidden_pad"]
    GP = dims["gate_pad"]
    OP = dims["out_pad"]
    O = dims["out_features"]
    NC = GP + E * HP

    # Batch tile: one grid step for small batches (the grid is a sequential loop
    # with ~0.35us/step overhead); cap at 256 so large batches yield >=2
    # "parallel" steps that can shard across v7x's two TensorCores.
    if batch_tile is None:
        batch_tile = min(256, _ceil_to(B, BF16_SUBLANE))
    BT = batch_tile
    assert BT % BF16_SUBLANE == 0, "batch tile must be a multiple of 16 (bf16 packing)"
    BP = _ceil_to(B, BT)

    # VMEM scaling guard: all weights stay resident in VMEM (their BlockSpecs
    # index block (0,0) every step).  If H grows large, tile wcombp over an
    # extra "arbitrary" grid axis instead of asserting here.
    weight_bytes = sum(int(np.prod(a.shape)) * a.dtype.itemsize
                       for a in (w1p, b1p, wcombp, bcombp, w2p, b2p))
    assert 2 * weight_bytes < 24 * 1024 * 1024, (
        "weights too large for the whole-resident VMEM design; tile the fused "
        "expert weight over an 'arbitrary' grid axis")

    # Only pad the batch if needed; x stays f32 (cast to bf16 inside the kernel).
    xp = x if BP == B else jnp.pad(x, ((0, BP - B), (0, 0)))

    flops = 2 * BP * (IN * HP + HP * NC + HP * OP)
    bytes_accessed = weight_bytes + BP * IN * x.dtype.itemsize + BP * OP * 4

    def resident_spec(a):
        # Whole-array weight block, VMEM-resident across all batch tiles.
        return pl.BlockSpec(a.shape, lambda i: (0, 0),
                            memory_space=pltpu.MemorySpace.VMEM)

    in_specs = [
        pl.BlockSpec((BT, IN), lambda i: (i, 0),
                     memory_space=pltpu.MemorySpace.VMEM),   # x, streamed by batch
        resident_spec(w1p), resident_spec(b1p),
        resident_spec(wcombp), resident_spec(bcombp),
        resident_spec(w2p), resident_spec(b2p),
    ]
    out_spec = pl.BlockSpec((BT, OP), lambda i: (i, 0),
                            memory_space=pltpu.MemorySpace.VMEM)

    out = pl.pallas_call(
        functools.partial(moe_net_kernel, num_experts=E, hidden_pad=HP,
                          gate_pad=GP),
        out_shape=jax.ShapeDtypeStruct((BP, OP), jnp.float32),
        grid_spec=pltpu.PrefetchScalarGridSpec(
            num_scalar_prefetch=0,
            grid=(BP // BT,),
            in_specs=in_specs,
            out_specs=out_spec),
        compiler_params=pltpu.CompilerParams(
            dimension_semantics=("parallel",)),
        cost_estimate=pl.CostEstimate(
            flops=int(flops),
            transcendentals=int(BP * GP),
            bytes_accessed=int(bytes_accessed)),
    )(xp, w1p, b1p, wcombp, bcombp, w2p, b2p)

    return out[:B, :O]


def init_params(key, num_experts, in_features, hidden_features, out_features):
    ks = jax.random.split(key, num_experts + 3)

    def lin(k, fan_in, fan_out):
        kw, kb = jax.random.split(k)
        w = jax.random.normal(kw, (fan_in, fan_out), jnp.float32) / jnp.sqrt(fan_in)
        b = jax.random.normal(kb, (1, fan_out), jnp.float32) * 0.01
        return w, b

    w1, b1 = lin(ks[0], in_features, hidden_features)
    ew, eb = [], []
    for e in range(num_experts):
        w, b = lin(ks[1 + e], hidden_features, hidden_features)
        ew.append(w)
        eb.append(b[0])
    we = jnp.stack(ew, axis=0)                               # [E, H, H]
    be = jnp.stack(eb, axis=0)                               # [E, H]
    wg, bg = lin(ks[num_experts + 1], hidden_features, num_experts)
    w2, b2 = lin(ks[num_experts + 2], hidden_features, out_features)
    return (w1, b1, we, be, wg, bg, w2, b2)


def reference_forward(x, params):
    # Pure float32 reference with the exact module semantics.
    w1, b1, we, be, wg, bg, w2, b2 = params
    h = jax.nn.relu(x @ w1 + b1)
    weights = jax.nn.softmax(h @ wg + bg, axis=1)            # [B, E]
    eo = jnp.stack([h @ we[e] + be[e] for e in range(we.shape[0])], axis=1)
    moe = jnp.einsum('be,beh->bh', weights, eo)
    return jax.nn.relu(moe) @ w2 + b2


if __name__ == "__main__":
    # Small shapes consistent with SimpleMoENet (Linear -> MoE(3 experts) -> Linear).
    B, IN, H, E, O = 32, 256, 128, 3, 10

    key = jax.random.PRNGKey(0)
    kx, kp = jax.random.split(key)
    x = jax.random.normal(kx, (B, IN), jnp.float32)
    params = init_params(kp, num_experts=E, in_features=IN,
                         hidden_features=H, out_features=O)
    packed, dims = pack_params(params)   # one-time weight packing (cold path)

    # Default batch_tile -> BT=32: the whole batch in a single grid step.
    out = jax.block_until_ready(simple_moe_net(x, packed, dims))
    ref = jax.block_until_ready(reference_forward(x, params))

    assert out.shape == (B, O)
    # Tolerance reflects bf16 matmul operands (f32 accumulation); semantics are
    # identical to the f32 reference.
    np.testing.assert_allclose(np.asarray(out), np.asarray(ref),
                               rtol=5e-2, atol=5e-2)

    print("KERNEL_OK")
</pallas_src>

<mosaic_0001>
module attributes {stable_mosaic.version = 11 : i64} {
  func.func @moe_net_kernel(%arg0: i32, %arg1: memref<32x256xf32, #tpu.memory_space<vmem>>, %arg2: memref<256x128xbf16, #tpu.memory_space<vmem>>, %arg3: memref<1x128xf32, #tpu.memory_space<vmem>>, %arg4: memref<128x512xbf16, #tpu.memory_space<vmem>>, %arg5: memref<1x512xf32, #tpu.memory_space<vmem>>, %arg6: memref<128x128xbf16, #tpu.memory_space<vmem>>, %arg7: memref<1x128xf32, #tpu.memory_space<vmem>>, %arg8: memref<32x128xf32, #tpu.memory_space<vmem>>) attributes {dimension_semantics = [#tpu.dimension_semantics<parallel>], iteration_bounds = array<i64: 1>, scalar_prefetch = 0 : i64, scratch_operands = 0 : i64, tpu.core_type = #tpu.core_type<tc>, window_params = [{transform_indices = @transform_0, window_bounds = array<i64: 32, 256>}, {pipeline_mode = #tpu.pipeline_mode<synchronous>, transform_indices = @transform_1, window_bounds = array<i64: 256, 128>}, {pipeline_mode = #tpu.pipeline_mode<synchronous>, transform_indices = @transform_2, window_bounds = array<i64: 1, 128>}, {pipeline_mode = #tpu.pipeline_mode<synchronous>, transform_indices = @transform_3, window_bounds = array<i64: 128, 512>}, {pipeline_mode = #tpu.pipeline_mode<synchronous>, transform_indices = @transform_4, window_bounds = array<i64: 1, 512>}, {pipeline_mode = #tpu.pipeline_mode<synchronous>, transform_indices = @transform_5, window_bounds = array<i64: 128, 128>}, {pipeline_mode = #tpu.pipeline_mode<synchronous>, transform_indices = @transform_6, window_bounds = array<i64: 1, 128>}, {transform_indices = @transform_7, window_bounds = array<i64: 32, 128>}]} {
    %c0 = arith.constant 0 : index
    %c0_0 = arith.constant 0 : index
    %0 = vector.load %arg1[%c0, %c0_0] : memref<32x256xf32, #tpu.memory_space<vmem>>, vector<32x256xf32>
    %1 = arith.truncf %0 : vector<32x256xf32> to vector<32x256xbf16>
    %c0_1 = arith.constant 0 : index
    %c0_2 = arith.constant 0 : index
    %2 = vector.load %arg2[%c0_1, %c0_2] : memref<256x128xbf16, #tpu.memory_space<vmem>>, vector<256x128xbf16>
    %cst = arith.constant dense<0.000000e+00> : vector<32x128xf32>
    %3 = tpu.matmul %1, %2, %cst {dimension_numbers = #tpu.dot_dimension_numbers<[1], [0], [0], [1], [0, 0, 1, 1], [], []>} : vector<32x256xbf16>, vector<256x128xbf16>, vector<32x128xf32> -> vector<32x128xf32>
    %c0_3 = arith.constant 0 : index
    %c0_4 = arith.constant 0 : index
    %4 = vector.load %arg3[%c0_3, %c0_4] : memref<1x128xf32, #tpu.memory_space<vmem>>, vector<1x128xf32>
    %5 = vector.broadcast %4 : vector<1x128xf32> to vector<32x128xf32>
    %6 = arith.addf %3, %5 : vector<32x128xf32>
    %cst_5 = arith.constant 0.000000e+00 : f32
    %7 = vector.broadcast %cst_5 : f32 to vector<32x128xf32>
    %8 = arith.maximumf %6, %7 : vector<32x128xf32>
    %9 = arith.truncf %8 : vector<32x128xf32> to vector<32x128xbf16>
    %c0_6 = arith.constant 0 : index
    %c0_7 = arith.constant 0 : index
    %10 = vector.load %arg4[%c0_6, %c0_7] : memref<128x512xbf16, #tpu.memory_space<vmem>>, vector<128x512xbf16>
    %cst_8 = arith.constant dense<0.000000e+00> : vector<32x512xf32>
    %11 = tpu.matmul %9, %10, %cst_8 {dimension_numbers = #tpu.dot_dimension_numbers<[1], [0], [0], [1], [0, 0, 1, 1], [], []>} : vector<32x128xbf16>, vector<128x512xbf16>, vector<32x512xf32> -> vector<32x512xf32>
    %c0_9 = arith.constant 0 : index
    %c0_10 = arith.constant 0 : index
    %12 = vector.load %arg5[%c0_9, %c0_10] : memref<1x512xf32, #tpu.memory_space<vmem>>, vector<1x512xf32>
    %13 = vector.broadcast %12 : vector<1x512xf32> to vector<32x512xf32>
    %14 = arith.addf %11, %13 : vector<32x512xf32>
    %15 = vector.extract_strided_slice %14 {offsets = [0, 0], sizes = [32, 128], strides = [1, 1]} : vector<32x512xf32> to vector<32x128xf32>
    %cst_11 = arith.constant dense<0xFF800000> : vector<32xf32>
    %16 = vector.multi_reduction <maximumf>, %15, %cst_11 [1] : vector<32x128xf32> to vector<32xf32>
    %17 = vector.shape_cast %16 : vector<32xf32> to vector<32x1xf32>
    %18 = vector.broadcast %17 : vector<32x1xf32> to vector<32x128xf32>
    %19 = arith.subf %15, %18 : vector<32x128xf32>
    %20 = math.exp %19 : vector<32x128xf32>
    %cst_12 = arith.constant dense<0.000000e+00> : vector<32xf32>
    %21 = vector.multi_reduction <add>, %20, %cst_12 [1] : vector<32x128xf32> to vector<32xf32>
    %22 = vector.shape_cast %21 : vector<32xf32> to vector<32x1xf32>
    %23 = tpu.reciprocal %22 {approx = true} : vector<32x1xf32> -> vector<32x1xf32>
    %24 = vector.extract_strided_slice %14 {offsets = [0, 128], sizes = [32, 384], strides = [1, 1]} : vector<32x512xf32> to vector<32x384xf32>
    %25 = vector.extract_strided_slice %20 {offsets = [0, 0], sizes = [32, 1], strides = [1, 1]} : vector<32x128xf32> to vector<32x1xf32>
    %26 = arith.mulf %25, %23 : vector<32x1xf32>
    %27 = vector.extract_strided_slice %20 {offsets = [0, 1], sizes = [32, 1], strides = [1, 1]} : vector<32x128xf32> to vector<32x1xf32>
    %28 = arith.mulf %27, %23 : vector<32x1xf32>
    %29 = vector.extract_strided_slice %20 {offsets = [0, 2], sizes = [32, 1], strides = [1, 1]} : vector<32x128xf32> to vector<32x1xf32>
    %30 = arith.mulf %29, %23 : vector<32x1xf32>
    %31 = vector.extract_strided_slice %24 {offsets = [0, 0], sizes = [32, 128], strides = [1, 1]} : vector<32x384xf32> to vector<32x128xf32>
    %32 = vector.broadcast %26 : vector<32x1xf32> to vector<32x128xf32>
    %33 = arith.mulf %32, %31 : vector<32x128xf32>
    %34 = vector.extract_strided_slice %24 {offsets = [0, 128], sizes = [32, 128], strides = [1, 1]} : vector<32x384xf32> to vector<32x128xf32>
    %35 = vector.broadcast %28 : vector<32x1xf32> to vector<32x128xf32>
    %36 = arith.mulf %35, %34 : vector<32x128xf32>
    %37 = arith.addf %33, %36 : vector<32x128xf32>
    %38 = vector.extract_strided_slice %24 {offsets = [0, 256], sizes = [32, 128], strides = [1, 1]} : vector<32x384xf32> to vector<32x128xf32>
    %39 = vector.broadcast %30 : vector<32x1xf32> to vector<32x128xf32>
    %40 = arith.mulf %39, %38 : vector<32x128xf32>
    %41 = arith.addf %37, %40 : vector<32x128xf32>
    %cst_13 = arith.constant 0.000000e+00 : f32
    %42 = vector.broadcast %cst_13 : f32 to vector<32x128xf32>
    %43 = arith.maximumf %41, %42 : vector<32x128xf32>
    %44 = arith.truncf %43 : vector<32x128xf32> to vector<32x128xbf16>
    %c0_14 = arith.constant 0 : index
    %c0_15 = arith.constant 0 : index
    %45 = vector.load %arg6[%c0_14, %c0_15] : memref<128x128xbf16, #tpu.memory_space<vmem>>, vector<128x128xbf16>
    %cst_16 = arith.constant dense<0.000000e+00> : vector<32x128xf32>
    %46 = tpu.matmul %44, %45, %cst_16 {dimension_numbers = #tpu.dot_dimension_numbers<[1], [0], [0], [1], [0, 0, 1, 1], [], []>} : vector<32x128xbf16>, vector<128x128xbf16>, vector<32x128xf32> -> vector<32x128xf32>
    %c0_17 = arith.constant 0 : index
    %c0_18 = arith.constant 0 : index
    %47 = vector.load %arg7[%c0_17, %c0_18] : memref<1x128xf32, #tpu.memory_space<vmem>>, vector<1x128xf32>
    %48 = vector.broadcast %47 : vector<1x128xf32> to vector<32x128xf32>
    %49 = arith.addf %46, %48 : vector<32x128xf32>
    %c0_19 = arith.constant 0 : index
    %c0_20 = arith.constant 0 : index
    %50 = vector.load %arg8[%c0_19, %c0_20] : memref<32x128xf32, #tpu.memory_space<vmem>>, vector<32x128xf32>
    tpu.vector_store %arg8[%c0_19, %c0_20], %49 {strides = array<i32>} : memref<32x128xf32, #tpu.memory_space<vmem>>, vector<32x128xf32>,
    return
  }
  func.func @transform_0(%arg0: i32) -> (i32, i32) {
    %c0_i32 = arith.constant 0 : i32
    %c0_i32_0 = arith.constant 0 : i32
    return %arg0, %c0_i32 : i32, i32
  }
  func.func @transform_1(%arg0: i32) -> (i32, i32) {
    %c0_i32 = arith.constant 0 : i32
    %c0_i32_0 = arith.constant 0 : i32
    %c0_i32_1 = arith.constant 0 : i32
    return %c0_i32, %c0_i32_0 : i32, i32
  }
  func.func @transform_2(%arg0: i32) -> (i32, i32) {
    %c0_i32 = arith.constant 0 : i32
    %c0_i32_0 = arith.constant 0 : i32
    %c0_i32_1 = arith.constant 0 : i32
    return %c0_i32, %c0_i32_0 : i32, i32
  }
  func.func @transform_3(%arg0: i32) -> (i32, i32) {
    %c0_i32 = arith.constant 0 : i32
    %c0_i32_0 = arith.constant 0 : i32
    %c0_i32_1 = arith.constant 0 : i32
    return %c0_i32, %c0_i32_0 : i32, i32
  }
  func.func @transform_4(%arg0: i32) -> (i32, i32) {
    %c0_i32 = arith.constant 0 : i32
    %c0_i32_0 = arith.constant 0 : i32
    %c0_i32_1 = arith.constant 0 : i32
    return %c0_i32, %c0_i32_0 : i32, i32
  }
  func.func @transform_5(%arg0: i32) -> (i32, i32) {
    %c0_i32 = arith.constant 0 : i32
    %c0_i32_0 = arith.constant 0 : i32
    %c0_i32_1 = arith.constant 0 : i32
    return %c0_i32, %c0_i32_0 : i32, i32
  }
  func.func @transform_6(%arg0: i32) -> (i32, i32) {
    %c0_i32 = arith.constant 0 : i32
    %c0_i32_0 = arith.constant 0 : i32
    %c0_i32_1 = arith.constant 0 : i32
    return %c0_i32, %c0_i32_0 : i32, i32
  }
  func.func @transform_7(%arg0: i32) -> (i32, i32) {
    %c0_i32 = arith.constant 0 : i32
    %c0_i32_0 = arith.constant 0 : i32
    return %arg0, %c0_i32 : i32, i32
  }
}

</mosaic_0001>

<llo_original>
// kernel: tpu_custom_call.1
$region0: #{tpu_custom_call.1}
  #allocation0 [shape = 'u32[]', space=smem, size = 0x4, offset = 0x4, fixed_abs, tag = 'smem constant byte address 0x4 - core index']
  #allocation1 [shape = 'u32[144,128]{1,0:T(1,128)}', space=vmem, size = 0x12000, scoped, tag = 'internal scratch']
  %s0 = inlined_call_operand.hbm [shape: f32[32,256], index: 0, kind: input, shape index: {}]
  %s1 = inlined_call_operand.hbm [shape: bf16[256,128], index: 1, kind: input, shape index: {}]
  %s2 = inlined_call_operand.vmem [shape: f32[1,128], index: 2, kind: input, shape index: {}]
  %s3 = inlined_call_operand.hbm [shape: bf16[128,512], index: 3, kind: input, shape index: {}]
  %s4 = inlined_call_operand.vmem [shape: f32[1,512], index: 4, kind: input, shape index: {}]
  %s5 = inlined_call_operand.hbm [shape: bf16[128,128], index: 5, kind: input, shape index: {}]
  %s6 = inlined_call_operand.vmem [shape: f32[1,128], index: 6, kind: input, shape index: {}]
  %s7 = inlined_call_operand.hbm [shape: f32[32,128], index: 7, kind: output, shape index: {}]
  %s8 = sld [smem:[#allocation0]]
  $region54: #{tpu_custom_call.1} parent=0
    _
  %s10 = ssub.s32 1, %s8
  %s11 = scalar_select 0, %s10, %s8
  $region1: #{tpu_custom_call.1} parent=0
    #allocation2 [shape = 'u8[32768]{0}', space=vmem, size = 0x8000, scoped, tag = 'input window, operand 0, single buffered']
    #allocation3 [shape = 's32[1]{0}', space=sflag, size = 0x4, scoped, tag = 'scoped memory for tpu_custom_call.1']
    #allocation4 [shape = 's32[1]{0}', space=sflag, size = 0x4, scoped, tag = 'scoped memory for tpu_custom_call.1']
    #allocation5 [shape = 'u8[65536]{0}', space=vmem, size = 0x10000, scoped, tag = 'input window, operand 1, single buffered']
    #allocation6 [shape = 's32[1]{0}', space=sflag, size = 0x4, scoped, tag = 'scoped memory for tpu_custom_call.1']
    #allocation7 [shape = 'u8[131072]{0}', space=vmem, size = 0x20000, scoped, tag = 'input window, operand 3, single buffered']
    #allocation8 [shape = 'u8[32768]{0}', space=vmem, size = 0x8000, scoped, tag = 'input window, operand 5, single buffered']
    #allocation9 [shape = 's32[1]{0}', space=sflag, size = 0x4, scoped, tag = 'scoped memory for tpu_custom_call.1']
    #allocation10 [shape = 'u8[16384]{0}', space=vmem, size = 0x4000, scoped, tag = 'output window, operand 0, single buffered']
    %12 = vsyncpa [#allocation3], 0
    %13 = vsyncpa [#allocation6], 0
    %14 = vsyncpa [#allocation9], 0
    %15 = vsyncpa [#allocation4], 0
    // Predicated region
    $region2: #{tpu_custom_call.1} parent=1 // pred_check
      _
    $region3: #{tpu_custom_call.1} parent=1 // pred_check_branch
      %17 = sbr.rel (0) target = $region5
    $region4: #{tpu_custom_call.1} parent=1 // pred_region
      %s19 = ssub.s32 1024, 1024
      %20 = vsyncadd [#allocation3], %s19
      %s21 = sshll.u32 [#allocation2], 4
      %s22 = int_to_ptr.vmem [resolvable:$true] %s21
      %27 = dma.hbm_to_vmem [thread:$0]  %s0, 1024, %s22, [#allocation3], 256, 256, 16
    $region5: #{tpu_custom_call.1} parent=1 // pred_fallthru
      _
    // Predicated region
    $region6: #{tpu_custom_call.1} parent=1 // pred_check
      _
    $region7: #{tpu_custom_call.1} parent=1 // pred_check_branch
      %29 = sbr.rel (0) target = $region9
    $region8: #{tpu_custom_call.1} parent=1 // pred_region
      %s31 = ssub.s32 2048, 2048
      %32 = vsyncadd [#allocation6], %s31
      %s33 = sshll.u32 [#allocation5], 4
      %s34 = int_to_ptr.vmem [resolvable:$true] %s33
      %39 = dma.hbm_to_vmem [thread:$0]  %s1, 2048, %s34, [#allocation6], 64, 64, 4
    $region9: #{tpu_custom_call.1} parent=1 // pred_fallthru
      _
    // Predicated region
    $region10: #{tpu_custom_call.1} parent=1 // pred_check
      _
    $region11: #{tpu_custom_call.1} parent=1 // pred_check_branch
      %41 = sbr.rel (0) target = $region13
    $region12: #{tpu_custom_call.1} parent=1 // pred_region
      _
    $region13: #{tpu_custom_call.1} parent=1 // pred_fallthru
      _
    // Predicated region
    $region14: #{tpu_custom_call.1} parent=1 // pred_check
      _
    $region15: #{tpu_custom_call.1} parent=1 // pred_check_branch
      %43 = sbr.rel (0) target = $region17
    $region16: #{tpu_custom_call.1} parent=1 // pred_region
      %s45 = ssub.s32 4096, 4096
      %46 = vsyncadd [#allocation6], %s45
      %s47 = sshll.u32 [#allocation7], 4
      %s48 = int_to_ptr.vmem [resolvable:$true] %s47
      %53 = dma.hbm_to_vmem [thread:$0]  %s3, 4096, %s48, [#allocation6], 256, 256, 16
    $region17: #{tpu_custom_call.1} parent=1 // pred_fallthru
      _
    // Predicated region
    $region18: #{tpu_custom_call.1} parent=1 // pred_check
      _
    $region19: #{tpu_custom_call.1} parent=1 // pred_check_branch
      %55 = sbr.rel (0) target = $region21
    $region20: #{tpu_custom_call.1} parent=1 // pred_region
      _
    $region21: #{tpu_custom_call.1} parent=1 // pred_fallthru
      _
    // Predicated region
    $region22: #{tpu_custom_call.1} parent=1 // pred_check
      _
    $region23: #{tpu_custom_call.1} parent=1 // pred_check_branch
      %57 = sbr.rel (0) target = $region25
    $region24: #{tpu_custom_call.1} parent=1 // pred_region
      %s59 = ssub.s32 1024, 1024
      %60 = vsyncadd [#allocation9], %s59
      %s61 = sshll.u32 [#allocation8], 4
      %s62 = int_to_ptr.vmem [resolvable:$true] %s61
      %67 = dma.hbm_to_vmem [thread:$0]  %s5, 1024, %s62, [#allocation9], 64, 64, 4
    $region25: #{tpu_custom_call.1} parent=1 // pred_fallthru
      _
    // Predicated region
    $region26: #{tpu_custom_call.1} parent=1 // pred_check
      _
    $region27: #{tpu_custom_call.1} parent=1 // pred_check_branch
      %69 = sbr.rel (0) target = $region29
    $region28: #{tpu_custom_call.1} parent=1 // pred_region
      _
    $region29: #{tpu_custom_call.1} parent=1 // pred_fallthru
      _
    // Predicated region
    $region30: #{tpu_custom_call.1} parent=1 // pred_check
      _
    $region31: #{tpu_custom_call.1} parent=1 // pred_check_branch
      %71 = sbr.rel (0) target = $region33
    $region32: #{tpu_custom_call.1} parent=1 // pred_region
      %72 = dma.done [#allocation3], 1024
    $region33: #{tpu_custom_call.1} parent=1 // pred_fallthru
      _
    // Predicated region
    $region34: #{tpu_custom_call.1} parent=1 // pred_check
      _
    $region35: #{tpu_custom_call.1} parent=1 // pred_check_branch
      %74 = sbr.rel (0) target = $region37
    $region36: #{tpu_custom_call.1} parent=1 // pred_region
      %75 = dma.done [#allocation6], 2048
    $region37: #{tpu_custom_call.1} parent=1 // pred_fallthru
      _
    // Predicated region
    $region38: #{tpu_custom_call.1} parent=1 // pred_check
      _
    $region39: #{tpu_custom_call.1} parent=1 // pred_check_branch
      %77 = sbr.rel (0) target = $region41
    $region40: #{tpu_custom_call.1} parent=1 // pred_region
      %78 = dma.done [#allocation6], 4096
    $region41: #{tpu_custom_call.1} parent=1 // pred_fallthru
      _
    // Predicated region
    $region42: #{tpu_custom_call.1} parent=1 // pred_check
      _
    $region43: #{tpu_custom_call.1} parent=1 // pred_check_branch
      %80 = sbr.rel (0) target = $region45
    $region44: #{tpu_custom_call.1} parent=1 // pred_region
      %81 = dma.done [#allocation9], 1024
    $region45: #{tpu_custom_call.1} parent=1 // pred_fallthru
      _
    %v83 = vld [vmem:[#allocation2] sm:$0xff]
    %v84 = vld [vmem:[#allocation2 + $0x8] sm:$0xff]
    %v85 = vld [vmem:[#allocation2 + $0x10] sm:$0xff]
    %v86 = vld [vmem:[#allocation2 + $0x18] sm:$0xff]
    %v87 = vld [vmem:[#allocation2 + $0x20] sm:$0xff]
    %v88 = vld [vmem:[#allocation2 + $0x28] sm:$0xff]
    %v89 = vld [vmem:[#allocation2 + $0x30] sm:$0xff]
    %v90 = vld [vmem:[#allocation2 + $0x38] sm:$0xff]
    %v91 = vpack.c.bf16 %v85, %v83
    %v92 = vpack.c.bf16 %v86, %v84
    %v93 = vpack.c.bf16 %v89, %v87
    %v94 = vpack.c.bf16 %v90, %v88
    %v95 = vld [vmem:[#allocation5] sm:$0xf]
    %v96 = vld [vmem:[#allocation5 + $0x4] sm:$0xf]
    %v97 = vld [vmem:[#allocation5 + $0x8] sm:$0xf]
    %v98 = vld [vmem:[#allocation5 + $0xc] sm:$0xf]
    %v99 = vld [vmem:[#allocation5 + $0x10] sm:$0xf]
    %v100 = vld [vmem:[#allocation5 + $0x14] sm:$0xf]
    %v101 = vld [vmem:[#allocation5 + $0x18] sm:$0xf]
    %v102 = vld [vmem:[#allocation5 + $0x1c] sm:$0xf]
    %v103 = vld [vmem:[#allocation5 + $0x20] sm:$0xf]
    %v104 = vld [vmem:[#allocation5 + $0x24] sm:$0xf]
    %v105 = vld [vmem:[#allocation5 + $0x28] sm:$0xf]
    %v106 = vld [vmem:[#allocation5 + $0x2c] sm:$0xf]
    %v107 = vld [vmem:[#allocation5 + $0x30] sm:$0xf]
    %v108 = vld [vmem:[#allocation5 + $0x34] sm:$0xf]
    %v109 = vld [vmem:[#allocation5 + $0x38] sm:$0xf]
    %v110 = vld [vmem:[#allocation5 + $0x3c] sm:$0xf]
    %v111 = vld [vmem:[#allocation5 + $0x40] sm:$0xf]
    %v112 = vld [vmem:[#allocation5 + $0x44] sm:$0xf]
    %v113 = vld [vmem:[#allocation5 + $0x48] sm:$0xf]
    %v114 = vld [vmem:[#allocation5 + $0x4c] sm:$0xf]
    %v115 = vld [vmem:[#allocation5 + $0x50] sm:$0xf]
    %v116 = vld [vmem:[#allocation5 + $0x54] sm:$0xf]
    %v117 = vld [vmem:[#allocation5 + $0x58] sm:$0xf]
    %v118 = vld [vmem:[#allocation5 + $0x5c] sm:$0xf]
    %v119 = vld [vmem:[#allocation5 + $0x60] sm:$0xf]
    %v120 = vld [vmem:[#allocation5 + $0x64] sm:$0xf]
    %v121 = vld [vmem:[#allocation5 + $0x68] sm:$0xf]
    %v122 = vld [vmem:[#allocation5 + $0x6c] sm:$0xf]
    %v123 = vld [vmem:[#allocation5 + $0x70] sm:$0xf]
    %v124 = vld [vmem:[#allocation5 + $0x74] sm:$0xf]
    %v125 = vld [vmem:[#allocation5 + $0x78] sm:$0xf]
    %v126 = vld [vmem:[#allocation5 + $0x7c] sm:$0xf]
    %v127 = vld [vmem:[%s2] sm:$0x1]
    %v129 = vlaneseq
    %v130 = vshrl.u32 %v129, 7
    %v131 = vsub.s32 0, %v130
    %v132 = vrot.slane %v127, %v131
    %v166 = vunpack.c.l.b16 %v95
    %v167 = vunpack.c.l.b16 %v96
    %v168 = vunpack.c.l.b16 %v97
    %v169 = vunpack.c.l.b16 %v98
    %v170 = vunpack.c.l.b16 %v99
    %v171 = vunpack.c.l.b16 %v100
    %v172 = vunpack.c.l.b16 %v101
    %v173 = vunpack.c.l.b16 %v102
    %v174 = vunpack.c.l.b16 %v103
    %v175 = vunpack.c.l.b16 %v104
    %v176 = vunpack.c.l.b16 %v105
    %v177 = vunpack.c.l.b16 %v106
    %v178 = vunpack.c.l.b16 %v107
    %v179 = vunpack.c.l.b16 %v108
    %v180 = vunpack.c.l.b16 %v109
    %v181 = vunpack.c.l.b16 %v110
    %v182 = vunpack.c.l.b16 %v111
    %v183 = vunpack.c.l.b16 %v112
    %v184 = vunpack.c.l.b16 %v113
    %v185 = vunpack.c.l.b16 %v114
    %v186 = vunpack.c.l.b16 %v115
    %v187 = vunpack.c.l.b16 %v116
    %v188 = vunpack.c.l.b16 %v117
    %v189 = vunpack.c.l.b16 %v118
    %v190 = vunpack.c.l.b16 %v119
    %v191 = vunpack.c.l.b16 %v120
    %v192 = vunpack.c.l.b16 %v121
    %v193 = vunpack.c.l.b16 %v122
    %v194 = vunpack.c.l.b16 %v123
    %v195 = vunpack.c.l.b16 %v124
    %v196 = vunpack.c.l.b16 %v125
    %v197 = vunpack.c.l.b16 %v126
    %v198 = vpack.c.b16 %v167, %v166
    %v199 = vpack.c.b16 %v169, %v168
    %v200 = vpack.c.b16 %v171, %v170
    %v201 = vpack.c.b16 %v173, %v172
    %v202 = vpack.c.b16 %v175, %v174
    %v203 = vpack.c.b16 %v177, %v176
    %v204 = vpack.c.b16 %v179, %v178
    %v205 = vpack.c.b16 %v181, %v180
    %v206 = vpack.c.b16 %v183, %v182
    %v207 = vpack.c.b16 %v185, %v184
    %v208 = vpack.c.b16 %v187, %v186
    %v209 = vpack.c.b16 %v189, %v188
    %v210 = vpack.c.b16 %v191, %v190
    %v211 = vpack.c.b16 %v193, %v192
    %v212 = vpack.c.b16 %v195, %v194
    %v213 = vpack.c.b16 %v197, %v196
    %230 = vmatprep.subr.bf16.mxu0 0
    %231 = vmatpush1.bf16.msra.mxu0 %v198
    %232 = vmatprep.subr.bf16.mxu0 0
    %233 = vmatpush1.bf16.msra.mxu0 %v199
    %234 = vmatprep.subr.bf16.mxu0 0
    %235 = vmatpush1.bf16.msra.mxu0 %v200
    %236 = vmatprep.subr.bf16.mxu0 0
    %237 = vmatpush1.bf16.msra.mxu0 %v201
    %238 = vmatprep.subr.bf16.mxu0 0
    %239 = vmatpush1.bf16.msra.mxu0 %v202
    %240 = vmatprep.subr.bf16.mxu0 0
    %241 = vmatpush1.bf16.msra.mxu0 %v203
    %242 = vmatprep.subr.bf16.mxu0 0
    %243 = vmatpush1.bf16.msra.mxu0 %v204
    %244 = vmatprep.subr.bf16.mxu0 0
    %245 = vmatpush1.bf16.msra.mxu0 %v205
    %246 = vmatprep.subr.bf16.mxu0 0
    %247 = vmatpush1.bf16.msra.mxu0 %v206
    %248 = vmatprep.subr.bf16.mxu0 0
    %249 = vmatpush1.bf16.msra.mxu0 %v207
    %250 = vmatprep.subr.bf16.mxu0 0
    %251 = vmatpush1.bf16.msra.mxu0 %v208
    %252 = vmatprep.subr.bf16.mxu0 0
    %253 = vmatpush1.bf16.msra.mxu0 %v209
    %254 = vmatprep.subr.bf16.mxu0 0
    %255 = vmatpush1.bf16.msra.mxu0 %v210
    %256 = vmatprep.subr.bf16.mxu0 0
    %257 = vmatpush1.bf16.msra.mxu0 %v211
    %258 = vmatprep.subr.bf16.mxu0 0
    %259 = vmatpush1.bf16.msra.mxu0 %v212
    %260 = vmatprep.subr.bf16.mxu0 0
    %261 = vmatpush1.bf16.msra.mxu0 %v213
    %262 = vmatprep.mubr.bf16.mxu0 %v92
    %263 = vmatmul.mubr.bf16.gmra.mrb[0].mxu0 %v91
    %v264 = vpop.f32.mrb[0].mxu0
    %v265 = vadd.f32 %v132, %v264
    %v266 = vpop.f32.mrb[0].mxu0
    %v267 = vpop.f32.mrb[0].mxu0
    %v268 = vadd.f32 %v132, %v267
    %v269 = vpop.f32.mrb[0].mxu0
    %270 = vmatprep.mubr.bf16.mxu0 %v94
    %271 = vmatmul.mubr.bf16.gmra.mrb[0].mxu0 %v93
    %v272 = vpop.f32.mrb[0].mxu0
    %v273 = vadd.f32 %v132, %v272
    %v274 = vpop.f32.mrb[0].mxu0
    %v275 = vpop.f32.mrb[0].mxu0
    %v276 = vadd.f32 %v132, %v275
    %v277 = vpop.f32.mrb[0].mxu0
    %278 = vdwg.mxu0
    %v279 = vmax.f32 %v265, 0.0
    %v280 = vmax.f32 %v268, 0.0
    %v281 = vmax.f32 %v273, 0.0
    %v282 = vmax.f32 %v276, 0.0
    %v283 = vpack.c.bf16 %v280, %v279
    %v284 = vpack.c.bf16 %v282, %v281
    %v285 = vld [vmem:[#allocation7] sm:$0xff]
    %v286 = vld [vmem:[#allocation7 + $0x8] sm:$0xff]
    %v287 = vld [vmem:[#allocation7 + $0x10] sm:$0xff]
    %v288 = vld [vmem:[#allocation7 + $0x18] sm:$0xff]
    %v289 = vld [vmem:[#allocation7 + $0x20] sm:$0xff]
    %v290 = vld [vmem:[#allocation7 + $0x28] sm:$0xff]
    %v291 = vld [vmem:[#allocation7 + $0x30] sm:$0xff]
    %v292 = vld [vmem:[#allocation7 + $0x38] sm:$0xff]
    %v293 = vld [vmem:[#allocation7 + $0x40] sm:$0xff]
    %v294 = vld [vmem:[#allocation7 + $0x48] sm:$0xff]
    %v295 = vld [vmem:[#allocation7 + $0x50] sm:$0xff]
    %v296 = vld [vmem:[#allocation7 + $0x58] sm:$0xff]
    %v297 = vld [vmem:[#allocation7 + $0x60] sm:$0xff]
    %v298 = vld [vmem:[#allocation7 + $0x68] sm:$0xff]
    %v299 = vld [vmem:[#allocation7 + $0x70] sm:$0xff]
    %v300 = vld [vmem:[#allocation7 + $0x78] sm:$0xff]
    %v301 = vld [vmem:[#allocation7 + $0x80] sm:$0xff]
    %v302 = vld [vmem:[#allocation7 + $0x88] sm:$0xff]
    %v303 = vld [vmem:[#allocation7 + $0x90] sm:$0xff]
    %v304 = vld [vmem:[#allocation7 + $0x98] sm:$0xff]
    %v305 = vld [vmem:[#allocation7 + $0xa0] sm:$0xff]
    %v306 = vld [vmem:[#allocation7 + $0xa8] sm:$0xff]
    %v307 = vld [vmem:[#allocation7 + $0xb0] sm:$0xff]
    %v308 = vld [vmem:[#allocation7 + $0xb8] sm:$0xff]
    %v309 = vld [vmem:[#allocation7 + $0xc0] sm:$0xff]
    %v310 = vld [vmem:[#allocation7 + $0xc8] sm:$0xff]
    %v311 = vld [vmem:[#allocation7 + $0xd0] sm:$0xff]
    %v312 = vld [vmem:[#allocation7 + $0xd8] sm:$0xff]
    %v313 = vld [vmem:[#allocation7 + $0xe0] sm:$0xff]
    %v314 = vld [vmem:[#allocation7 + $0xe8] sm:$0xff]
    %v315 = vld [vmem:[#allocation7 + $0xf0] sm:$0xff]
    %v316 = vld [vmem:[#allocation7 + $0xf8] sm:$0xff]
    %v317 = vld [vmem:[%s4] sm:$0xf]
    %v319 = vlaneseq
    %v320 = vshrl.u32 %v319, 7
    %v321 = vsub.s32 0, %v320
    %v322 = vrot.slane %v317, %v321
    %v323 = vlaneseq
    %v324 = vshrl.u32 %v323, 7
    %v325 = vsub.s32 1, %v324
    %v326 = vrot.slane %v317, %v325
    %v327 = vlaneseq
    %v328 = vshrl.u32 %v327, 7
    %v329 = vsub.s32 2, %v328
    %v330 = vrot.slane %v317, %v329
    %v331 = vlaneseq
    %v332 = vshrl.u32 %v331, 7
    %v333 = vsub.s32 3, %v332
    %v334 = vrot.slane %v317, %v333
    %v371 = vunpack.c.l.b16 %v285
    %v372 = vunpack.c.h.b16 %v285
    %v373 = vunpack.c.l.b16 %v286
    %v374 = vunpack.c.h.b16 %v286
    %v375 = vunpack.c.l.b16 %v287
    %v376 = vunpack.c.h.b16 %v287
    %v377 = vunpack.c.l.b16 %v288
    %v378 = vunpack.c.h.b16 %v288
    %v379 = vunpack.c.l.b16 %v289
    %v380 = vunpack.c.h.b16 %v289
    %v381 = vunpack.c.l.b16 %v290
    %v382 = vunpack.c.h.b16 %v290
    %v383 = vunpack.c.l.b16 %v291
    %v384 = vunpack.c.h.b16 %v291
    %v385 = vunpack.c.l.b16 %v292
    %v386 = vunpack.c.h.b16 %v292
    %v387 = vunpack.c.l.b16 %v293
    %v388 = vunpack.c.h.b16 %v293
    %v389 = vunpack.c.l.b16 %v294
    %v390 = vunpack.c.h.b16 %v294
    %v391 = vunpack.c.l.b16 %v295
    %v392 = vunpack.c.h.b16 %v295
    %v393 = vunpack.c.l.b16 %v296
    %v394 = vunpack.c.h.b16 %v296
    %v395 = vunpack.c.l.b16 %v297
    %v396 = vunpack.c.h.b16 %v297
    %v397 = vunpack.c.l.b16 %v298
    %v398 = vunpack.c.h.b16 %v298
    %v399 = vunpack.c.l.b16 %v299
    %v400 = vunpack.c.h.b16 %v299
    %v401 = vunpack.c.l.b16 %v300
    %v402 = vunpack.c.h.b16 %v300
    %v403 = vunpack.c.l.b16 %v301
    %v404 = vunpack.c.h.b16 %v301
    %v405 = vunpack.c.l.b16 %v302
    %v406 = vunpack.c.h.b16 %v302
    %v407 = vunpack.c.l.b16 %v303
    %v408 = vunpack.c.h.b16 %v303
    %v409 = vunpack.c.l.b16 %v304
    %v410 = vunpack.c.h.b16 %v304
    %v411 = vunpack.c.l.b16 %v305
    %v412 = vunpack.c.h.b16 %v305
    %v413 = vunpack.c.l.b16 %v306
    %v414 = vunpack.c.h.b16 %v306
    %v415 = vunpack.c.l.b16 %v307
    %v416 = vunpack.c.h.b16 %v307
    %v417 = vunpack.c.l.b16 %v308
    %v418 = vunpack.c.h.b16 %v308
    %v419 = vunpack.c.l.b16 %v309
    %v420 = vunpack.c.h.b16 %v309
    %v421 = vunpack.c.l.b16 %v310
    %v422 = vunpack.c.h.b16 %v310
    %v423 = vunpack.c.l.b16 %v311
    %v424 = vunpack.c.h.b16 %v311
    %v425 = vunpack.c.l.b16 %v312
    %v426 = vunpack.c.h.b16 %v312
    %v427 = vunpack.c.l.b16 %v313
    %v428 = vunpack.c.h.b16 %v313
    %v429 = vunpack.c.l.b16 %v314
    %v430 = vunpack.c.h.b16 %v314
    %v431 = vunpack.c.l.b16 %v315
    %v432 = vunpack.c.h.b16 %v315
    %v433 = vunpack.c.l.b16 %v316
    %v434 = vunpack.c.h.b16 %v316
    %v435 = vpack.c.b16 %v375, %v371
    %v436 = vpack.c.b16 %v376, %v372
    %v437 = vpack.c.b16 %v377, %v373
    %v438 = vpack.c.b16 %v378, %v374
    %v439 = vpack.c.b16 %v383, %v379
    %v440 = vpack.c.b16 %v384, %v380
    %v441 = vpack.c.b16 %v385, %v381
    %v442 = vpack.c.b16 %v386, %v382
    %v443 = vpack.c.b16 %v391, %v387
    %v444 = vpack.c.b16 %v392, %v388
    %v445 = vpack.c.b16 %v393, %v389
    %v446 = vpack.c.b16 %v394, %v390
    %v447 = vpack.c.b16 %v399, %v395
    %v448 = vpack.c.b16 %v400, %v396
    %v449 = vpack.c.b16 %v401, %v397
    %v450 = vpack.c.b16 %v402, %v398
    %v451 = vpack.c.b16 %v407, %v403
    %v452 = vpack.c.b16 %v408, %v404
    %v453 = vpack.c.b16 %v409, %v405
    %v454 = vpack.c.b16 %v410, %v406
    %v455 = vpack.c.b16 %v415, %v411
    %v456 = vpack.c.b16 %v416, %v412
    %v457 = vpack.c.b16 %v417, %v413
    %v458 = vpack.c.b16 %v418, %v414
    %v459 = vpack.c.b16 %v423, %v419
    %v460 = vpack.c.b16 %v424, %v420
    %v461 = vpack.c.b16 %v425, %v421
    %v462 = vpack.c.b16 %v426, %v422
    %v463 = vpack.c.b16 %v431, %v427
    %v464 = vpack.c.b16 %v432, %v428
    %v465 = vpack.c.b16 %v433, %v429
    %v466 = vpack.c.b16 %v434, %v430
    %499 = vmatprep.subr.bf16.mxu0 %v436
    %500 = vmatpush1.bf16.msra.mxu0 %v435
    %501 = vmatprep.subr.bf16.mxu0 %v440
    %502 = vmatpush1.bf16.msra.mxu0 %v439
    %503 = vmatprep.subr.bf16.mxu0 %v444
    %504 = vmatpush1.bf16.msra.mxu0 %v443
    %505 = vmatprep.subr.bf16.mxu0 %v448
    %506 = vmatpush1.bf16.msra.mxu0 %v447
    %507 = vmatprep.subr.bf16.mxu0 %v452
    %508 = vmatpush1.bf16.msra.mxu0 %v451
    %509 = vmatprep.subr.bf16.mxu0 %v456
    %510 = vmatpush1.bf16.msra.mxu0 %v455
    %511 = vmatprep.subr.bf16.mxu0 %v460
    %512 = vmatpush1.bf16.msra.mxu0 %v459
    %513 = vmatprep.subr.bf16.mxu0 %v464
    %514 = vmatpush1.bf16.msra.mxu0 %v463
    %515 = vmatprep.subr.bf16.mxu0 0
    %516 = vmatpush1.bf16.msra.mxu0 0
    %517 = vmatprep.subr.bf16.mxu0 0
    %518 = vmatpush1.bf16.msra.mxu0 0
    %519 = vmatprep.subr.bf16.mxu0 0
    %520 = vmatpush1.bf16.msra.mxu0 0
    %521 = vmatprep.subr.bf16.mxu0 0
    %522 = vmatpush1.bf16.msra.mxu0 0
    %523 = vmatprep.subr.bf16.mxu0 0
    %524 = vmatpush1.bf16.msra.mxu0 0
    %525 = vmatprep.subr.bf16.mxu0 0
    %526 = vmatpush1.bf16.msra.mxu0 0
    %527 = vmatprep.subr.bf16.mxu0 0
    %528 = vmatpush1.bf16.msra.mxu0 0
    %529 = vmatprep.subr.bf16.mxu0 0
    %530 = vmatpush1.bf16.msra.mxu0 0
    %531 = vmatprep.mubr.bf16.mxu0 0
    %532 = vmatmul.mubr.bf16.gmra.mrb[0].mxu0 %v283
    %v533 = vpop.f32.mrb[0].mxu0
    %v534 = vadd.f32 %v322, %v533
    %v535 = vpop.f32.mrb[0].mxu0
    %v536 = vadd.f32 %v326, %v535
    %v537 = vpop.f32.mrb[0].mxu0
    %v538 = vadd.f32 %v322, %v537
    %v539 = vpop.f32.mrb[0].mxu0
    %v540 = vadd.f32 %v326, %v539
    %541 = vmatprep.mubr.bf16.mxu0 0
    %542 = vmatmul.mubr.bf16.gmra.mrb[0].mxu0 %v284
    %v543 = vpop.f32.mrb[0].mxu0
    %v544 = vadd.f32 %v322, %v543
    %v545 = vpop.f32.mrb[0].mxu0
    %v546 = vadd.f32 %v326, %v545
    %v547 = vpop.f32.mrb[0].mxu0
    %v548 = vadd.f32 %v322, %v547
    %v549 = vpop.f32.mrb[0].mxu0
    %v550 = vadd.f32 %v326, %v549
    %551 = vdwg.mxu0
    %552 = vmatprep.subr.bf16.mxu0 %v438
    %553 = vmatpush1.bf16.msra.mxu0 %v437
    %554 = vmatprep.subr.bf16.mxu0 %v442
    %555 = vmatpush1.bf16.msra.mxu0 %v441
    %556 = vmatprep.subr.bf16.mxu0 %v446
    %557 = vmatpush1.bf16.msra.mxu0 %v445
    %558 = vmatprep.subr.bf16.mxu0 %v450
    %559 = vmatpush1.bf16.msra.mxu0 %v449
    %560 = vmatprep.subr.bf16.mxu0 %v454
    %561 = vmatpush1.bf16.msra.mxu0 %v453
    %562 = vmatprep.subr.bf16.mxu0 %v458
    %563 = vmatpush1.bf16.msra.mxu0 %v457
    %564 = vmatprep.subr.bf16.mxu0 %v462
    %565 = vmatpush1.bf16.msra.mxu0 %v461
    %566 = vmatprep.subr.bf16.mxu0 %v466
    %567 = vmatpush1.bf16.msra.mxu0 %v465
    %568 = vmatprep.subr.bf16.mxu0 0
    %569 = vmatpush1.bf16.msra.mxu0 0
    %570 = vmatprep.subr.bf16.mxu0 0
    %571 = vmatpush1.bf16.msra.mxu0 0
    %572 = vmatprep.subr.bf16.mxu0 0
    %573 = vmatpush1.bf16.msra.mxu0 0
    %574 = vmatprep.subr.bf16.mxu0 0
    %575 = vmatpush1.bf16.msra.mxu0 0
    %576 = vmatprep.subr.bf16.mxu0 0
    %577 = vmatpush1.bf16.msra.mxu0 0
    %578 = vmatprep.subr.bf16.mxu0 0
    %579 = vmatpush1.bf16.msra.mxu0 0
    %580 = vmatprep.subr.bf16.mxu0 0
    %581 = vmatpush1.bf16.msra.mxu0 0
    %582 = vmatprep.subr.bf16.mxu0 0
    %583 = vmatpush1.bf16.msra.mxu0 0
    %584 = vmatprep.mubr.bf16.mxu0 0
    %585 = vmatmul.mubr.bf16.gmra.mrb[0].mxu0 %v283
    %v586 = vpop.f32.mrb[0].mxu0
    %v587 = vadd.f32 %v330, %v586
    %v588 = vpop.f32.mrb[0].mxu0
    %v589 = vadd.f32 %v334, %v588
    %v590 = vpop.f32.mrb[0].mxu0
    %v591 = vadd.f32 %v330, %v590
    %v592 = vpop.f32.mrb[0].mxu0
    %v593 = vadd.f32 %v334, %v592
    %594 = vmatprep.mubr.bf16.mxu0 0
    %595 = vmatmul.mubr.bf16.gmra.mrb[0].mxu0 %v284
    %v596 = vpop.f32.mrb[0].mxu0
    %v597 = vadd.f32 %v330, %v596
    %v598 = vpop.f32.mrb[0].mxu0
    %v599 = vadd.f32 %v334, %v598
    %v600 = vpop.f32.mrb[0].mxu0
    %v601 = vadd.f32 %v330, %v600
    %v602 = vpop.f32.mrb[0].mxu0
    %v603 = vadd.f32 %v334, %v602
    %604 = vdwg.mxu0
    %605 = vmax.xlane.f32.xlu0 %v534
    %v606 = vpop.xlane.xlu0 %605
    %607 = vmax.xlane.f32.xlu0 %v538
    %v608 = vpop.xlane.xlu0 %607
    %609 = vmax.xlane.f32.xlu0 %v544
    %v610 = vpop.xlane.xlu0 %609
    %611 = vmax.xlane.f32.xlu0 %v548
    %v612 = vpop.xlane.xlu0 %611
    %v613 = vsub.f32 %v534, %v606
    %v614 = vsub.f32 %v538, %v608
    %v615 = vsub.f32 %v544, %v610
    %v616 = vsub.f32 %v548, %v612
    %v617 = vmul.f32 %v613, 1.442695
    %v618 = vpow.pop %v617
    %v619 = vmul.f32 %v614, 1.442695
    %v620 = vpow.pop %v619
    %v621 = vmul.f32 %v615, 1.442695
    %v622 = vpow.pop %v621
    %v623 = vmul.f32 %v616, 1.442695
    %v624 = vpow.pop %v623
    %625 = vadd.xlane.f32.xlu0 %v618
    %v626 = vpop.xlane.xlu0 %625
    %627 = vadd.xlane.f32.xlu0 %v620
    %v628 = vpop.xlane.xlu0 %627
    %629 = vadd.xlane.f32.xlu0 %v622
    %v630 = vpop.xlane.xlu0 %629
    %631 = vadd.xlane.f32.xlu0 %v624
    %v632 = vpop.xlane.xlu0 %631
    %v633 = vrcp.pop %v626
    %v634 = vrcp.pop %v628
    %v635 = vrcp.pop %v630
    %v636 = vrcp.pop %v632
    %v637 = vmul.f32 %v618, %v633
    %v638 = vmul.f32 %v620, %v634
    %v639 = vmul.f32 %v622, %v635
    %v640 = vmul.f32 %v624, %v636
    %642 = vset.pattern.permute.xlu0 0
    %643 = vperm.xlu0 %642, %v637
    %v644 = vpop.permute.xlu0 %643
    %647 = vset.pattern.permute.xlu0 0
    %648 = vperm.xlu0 %647, %v638
    %v649 = vpop.permute.xlu0 %648
    %652 = vset.pattern.permute.xlu0 0
    %653 = vperm.xlu0 %652, %v639
    %v654 = vpop.permute.xlu0 %653
    %657 = vset.pattern.permute.xlu0 0
    %658 = vperm.xlu0 %657, %v640
    %v659 = vpop.permute.xlu0 %658
    %v661 = vmul.f32 %v644, %v536
    %v662 = vmul.f32 %v649, %v540
    %v663 = vmul.f32 %v654, %v546
    %v664 = vmul.f32 %v659, %v550
    %665 = vset.pattern.permute.xlu0 1
    %666 = vperm.xlu0 %665, %v637
    %v667 = vpop.permute.xlu0 %666
    %669 = vset.pattern.permute.xlu0 1
    %670 = vperm.xlu0 %669, %v638
    %v671 = vpop.permute.xlu0 %670
    %673 = vset.pattern.permute.xlu0 1
    %674 = vperm.xlu0 %673, %v639
    %v675 = vpop.permute.xlu0 %674
    %677 = vset.pattern.permute.xlu0 1
    %678 = vperm.xlu0 %677, %v640
    %v679 = vpop.permute.xlu0 %678
    %v681 = vmul.f32 %v667, %v587
    %v682 = vmul.f32 %v671, %v591
    %v683 = vmul.f32 %v675, %v597
    %v684 = vmul.f32 %v679, %v601
    %v685 = vadd.f32 %v661, %v681
    %v686 = vadd.f32 %v662, %v682
    %v687 = vadd.f32 %v663, %v683
    %v688 = vadd.f32 %v664, %v684
    %689 = vset.pattern.permute.xlu0 2
    %690 = vperm.xlu0 %689, %v637
    %v691 = vpop.permute.xlu0 %690
    %693 = vset.pattern.permute.xlu0 2
    %694 = vperm.xlu0 %693, %v638
    %v695 = vpop.permute.xlu0 %694
    %697 = vset.pattern.permute.xlu0 2
    %698 = vperm.xlu0 %697, %v639
    %v699 = vpop.permute.xlu0 %698
    %701 = vset.pattern.permute.xlu0 2
    %702 = vperm.xlu0 %701, %v640
    %v703 = vpop.permute.xlu0 %702
    %v705 = vmul.f32 %v691, %v589
    %v706 = vmul.f32 %v695, %v593
    %v707 = vmul.f32 %v699, %v599
    %v708 = vmul.f32 %v703, %v603
    %v709 = vadd.f32 %v685, %v705
    %v710 = vadd.f32 %v686, %v706
    %v711 = vadd.f32 %v687, %v707
    %v712 = vadd.f32 %v688, %v708
    %v713 = vmax.f32 %v709, 0.0
    %v714 = vmax.f32 %v710, 0.0
    %v715 = vmax.f32 %v711, 0.0
    %v716 = vmax.f32 %v712, 0.0
    %v717 = vpack.c.bf16 %v714, %v713
    %v718 = vpack.c.bf16 %v716, %v715
    %v719 = vld [vmem:[#allocation8] sm:$0xf]
    %v720 = vld [vmem:[#allocation8 + $0x4] sm:$0xf]
    %v721 = vld [vmem:[#allocation8 + $0x8] sm:$0xf]
    %v722 = vld [vmem:[#allocation8 + $0xc] sm:$0xf]
    %v723 = vld [vmem:[#allocation8 + $0x10] sm:$0xf]
    %v724 = vld [vmem:[#allocation8 + $0x14] sm:$0xf]
    %v725 = vld [vmem:[#allocation8 + $0x18] sm:$0xf]
    %v726 = vld [vmem:[#allocation8 + $0x1c] sm:$0xf]
    %v727 = vld [vmem:[#allocation8 + $0x20] sm:$0xf]
    %v728 = vld [vmem:[#allocation8 + $0x24] sm:$0xf]
    %v729 = vld [vmem:[#allocation8 + $0x28] sm:$0xf]
    %v730 = vld [vmem:[#allocation8 + $0x2c] sm:$0xf]
    %v731 = vld [vmem:[#allocation8 + $0x30] sm:$0xf]
    %v732 = vld [vmem:[#allocation8 + $0x34] sm:$0xf]
    %v733 = vld [vmem:[#allocation8 + $0x38] sm:$0xf]
    %v734 = vld [vmem:[#allocation8 + $0x3c] sm:$0xf]
    %v735 = vld [vmem:[%s6] sm:$0x1]
    %v737 = vlaneseq
    %v738 = vshrl.u32 %v737, 7
    %v739 = vsub.s32 0, %v738
    %v740 = vrot.slane %v735, %v739
    %v758 = vunpack.c.l.b16 %v719
    %v759 = vunpack.c.l.b16 %v720
    %v760 = vunpack.c.l.b16 %v721
    %v761 = vunpack.c.l.b16 %v722
    %v762 = vunpack.c.l.b16 %v723
    %v763 = vunpack.c.l.b16 %v724
    %v764 = vunpack.c.l.b16 %v725
    %v765 = vunpack.c.l.b16 %v726
    %v766 = vunpack.c.l.b16 %v727
    %v767 = vunpack.c.l.b16 %v728
    %v768 = vunpack.c.l.b16 %v729
    %v769 = vunpack.c.l.b16 %v730
    %v770 = vunpack.c.l.b16 %v731
    %v771 = vunpack.c.l.b16 %v732
    %v772 = vunpack.c.l.b16 %v733
    %v773 = vunpack.c.l.b16 %v734
    %v774 = vpack.c.b16 %v759, %v758
    %v775 = vpack.c.b16 %v761, %v760
    %v776 = vpack.c.b16 %v763, %v762
    %v777 = vpack.c.b16 %v765, %v764
    %v778 = vpack.c.b16 %v767, %v766
    %v779 = vpack.c.b16 %v769, %v768
    %v780 = vpack.c.b16 %v771, %v770
    %v781 = vpack.c.b16 %v773, %v772
    %790 = vmatprep.subr.bf16.mxu0 0
    %791 = vmatpush1.bf16.msra.mxu0 %v774
    %792 = vmatprep.subr.bf16.mxu0 0
    %793 = vmatpush1.bf16.msra.mxu0 %v775
    %794 = vmatprep.subr.bf16.mxu0 0
    %795 = vmatpush1.bf16.msra.mxu0 %v776
    %796 = vmatprep.subr.bf16.mxu0 0
    %797 = vmatpush1.bf16.msra.mxu0 %v777
    %798 = vmatprep.subr.bf16.mxu0 0
    %799 = vmatpush1.bf16.msra.mxu0 %v778
    %800 = vmatprep.subr.bf16.mxu0 0
    %801 = vmatpush1.bf16.msra.mxu0 %v779
    %802 = vmatprep.subr.bf16.mxu0 0
    %803 = vmatpush1.bf16.msra.mxu0 %v780
    %804 = vmatprep.subr.bf16.mxu0 0
    %805 = vmatpush1.bf16.msra.mxu0 %v781
    %806 = vmatprep.subr.bf16.mxu0 0
    %807 = vmatpush1.bf16.msra.mxu0 0
    %808 = vmatprep.subr.bf16.mxu0 0
    %809 = vmatpush1.bf16.msra.mxu0 0
    %810 = vmatprep.subr.bf16.mxu0 0
    %811 = vmatpush1.bf16.msra.mxu0 0
    %812 = vmatprep.subr.bf16.mxu0 0
    %813 = vmatpush1.bf16.msra.mxu0 0
    %814 = vmatprep.subr.bf16.mxu0 0
    %815 = vmatpush1.bf16.msra.mxu0 0
    %816 = vmatprep.subr.bf16.mxu0 0
    %817 = vmatpush1.bf16.msra.mxu0 0
    %818 = vmatprep.subr.bf16.mxu0 0
    %819 = vmatpush1.bf16.msra.mxu0 0
    %820 = vmatprep.subr.bf16.mxu0 0
    %821 = vmatpush1.bf16.msra.mxu0 0
    %822 = vmatprep.mubr.bf16.mxu0 0
    %823 = vmatmul.mubr.bf16.gmra.mrb[0].mxu0 %v717
    %v824 = vpop.f32.mrb[0].mxu0
    %v825 = vadd.f32 %v740, %v824
    %v826 = vpop.f32.mrb[0].mxu0
    %v827 = vpop.f32.mrb[0].mxu0
    %v828 = vadd.f32 %v740, %v827
    %v829 = vpop.f32.mrb[0].mxu0
    %830 = vmatprep.mubr.bf16.mxu0 0
    %831 = vmatmul.mubr.bf16.gmra.mrb[0].mxu0 %v718
    %v832 = vpop.f32.mrb[0].mxu0
    %v833 = vadd.f32 %v740, %v832
    %v834 = vpop.f32.mrb[0].mxu0
    %v835 = vpop.f32.mrb[0].mxu0
    %v836 = vadd.f32 %v740, %v835
    %v837 = vpop.f32.mrb[0].mxu0
    %838 = vdwg.mxu0
    %839 = vst [vmem:[#allocation10] sm:$0xff] %v825
    %840 = vst [vmem:[#allocation10 + $0x8] sm:$0xff] %v828
    %841 = vst [vmem:[#allocation10 + $0x10] sm:$0xff] %v833
    %842 = vst [vmem:[#allocation10 + $0x18] sm:$0xff] %v836
    // Predicated region
    $region46: #{tpu_custom_call.1} parent=1 // pred_check
      _
    $region47: #{tpu_custom_call.1} parent=1 // pred_check_branch
      %844 = sbr.rel (0) target = $region49
    $region48: #{tpu_custom_call.1} parent=1 // pred_region
      %s846 = ssub.s32 512, 512
      %847 = vsyncadd [#allocation4], %s846
      %s848 = sshll.u32 [#allocation10], 4
      %s849 = int_to_ptr.vmem [resolvable:$true] %s848
      %854 = dma.vmem_to_hbm [thread:$0]  %s849, 512, %s7, [#allocation4], 128, 128, 8
    $region49: #{tpu_custom_call.1} parent=1 // pred_fallthru
      _
    // Predicated region
    $region50: #{tpu_custom_call.1} parent=1 // pred_check
      _
    $region51: #{tpu_custom_call.1} parent=1 // pred_check_branch
      %856 = sbr.rel (0) target = $region53
    $region52: #{tpu_custom_call.1} parent=1 // pred_region
      %857 = dma.done [#allocation4], 512
    $region53: #{tpu_custom_call.1} parent=1 // pred_fallthru
      _
    %858 = vsyncpa [#allocation3], 1
    %859 = vsyncpa [#allocation6], 1
    %860 = vsyncpa [#allocation9], 1
    %861 = vsyncpa [#allocation4], 1

</llo_original>
